<compile_context>
chip_gen: v5e
topology: v5e:2x2
jax: 0.10.0
libtpu: 0.0.40
codegen_flags: <defaults>
</compile_context>

<pallas_src>
import functools
import math

import jax
import jax.numpy as jnp
import numpy as np
from jax.experimental import pallas as pl
from jax.experimental.pallas import tpu as pltpu

_BN_EPS = 1e-5
_TILE_BUDGET_BYTES = 12 << 20     # 8 tile buffers (4 arrays x double buffer)
_VMEM_LIMIT_BYTES = 32 << 20      # fits v5e/v6e/v7x scoped VMEM comfortably


def _spatial_agg_kernel(wr_ref, wi_ref, cw_ref, xr_ref, xi_ref,
                        or_ref, oi_ref, *, inv_bn, inv_2c):
    n = pl.program_id(0)

    xr = xr_ref[0]                # (C, T), native dtype
    xi = xi_ref[0]

    # Channel mean / max of concat([x_rgb, x_ir], channel)  -> (1, T), f32.
    ch_sum = (jnp.sum(xr, axis=0, keepdims=True, dtype=jnp.float32) +
              jnp.sum(xi, axis=0, keepdims=True, dtype=jnp.float32))
    ch_mean = ch_sum * inv_2c
    ch_max = jnp.maximum(jnp.max(xr, axis=0, keepdims=True),
                         jnp.max(xi, axis=0, keepdims=True)).astype(jnp.float32)

    def spatial_gate(w_mean, w_max):
        s = (w_mean * ch_mean + w_max * ch_max) * inv_bn   # 1x1 conv + BN(1)
        s = s * jax.nn.sigmoid(s)                          # SiLU
        return jax.nn.sigmoid(s)                           # (1, T), f32

    w_rs = spatial_gate(cw_ref[0, 0], cw_ref[0, 1])        # conv_rgb weights
    w_ts = spatial_gate(cw_ref[1, 0], cw_ref[1, 1])        # conv_ir  weights

    # Fold everything into a single broadcast scale:
    #   out = bn( w_illu * (gate*x + x) ) = (w_illu*inv_bn) * (gate+1) * x
    scale_r = (wr_ref[n] * inv_bn) * (w_rs + 1.0)          # (1, T), f32
    scale_i = (wi_ref[n] * inv_bn) * (w_ts + 1.0)

    or_ref[0] = (scale_r * xr).astype(or_ref.dtype)
    oi_ref[0] = (scale_i * xi).astype(oi_ref.dtype)


def _pick_tile_hw(c, hw, itemsize):
    """Largest multiple-of-128 lane tile (<=2048) whose 8-buffer footprint
    stays inside the budget; never larger than the padded spatial extent."""
    hw_ceil = ((hw + 127) // 128) * 128
    max_tile = _TILE_BUDGET_BYTES // (8 * max(c, 1) * itemsize)
    max_tile = max(128, (max_tile // 128) * 128)
    return min(max_tile, 2048, hw_ceil)


def spatial_aggregation(x_rgb, x_ir, w_rgb, w_ir, conv_w, *, eps=_BN_EPS):
    """x_rgb/x_ir: (N,C,H,W).  w_rgb/w_ir: per-sample illumination scalars,
    any shape broadcasting from (N,1,1,1).  conv_w: (2,2), row 0 = conv_rgb
    [w_mean, w_max], row 1 = conv_ir."""
    N, C, H, W = x_rgb.shape
    HW = H * W
    dtype = x_rgb.dtype
    itemsize = jnp.dtype(dtype).itemsize

    tile_hw = _pick_tile_hw(C, HW, itemsize)
    num_tiles = -(-HW // tile_hw)            # cdiv
    hw_pad = num_tiles * tile_hw

    xr = x_rgb.reshape(N, C, HW)
    xi = x_ir.reshape(N, C, HW)
    if hw_pad != HW:
        pad = ((0, 0), (0, 0), (0, hw_pad - HW))
        xr = jnp.pad(xr, pad)
        xi = jnp.pad(xi, pad)

    wr = jnp.asarray(w_rgb, jnp.float32).reshape(N)
    wi = jnp.asarray(w_ir, jnp.float32).reshape(N)
    cw = jnp.asarray(conv_w, jnp.float32).reshape(2, 2)

    inv_bn = 1.0 / math.sqrt(1.0 + eps)      # compile-time constant
    inv_2c = 1.0 / (2.0 * C)

    grid_spec = pltpu.PrefetchScalarGridSpec(
        num_scalar_prefetch=0,
        grid=(N, num_tiles),
        in_specs=[
            pl.BlockSpec(memory_space=pltpu.SMEM),                   # w_rgb (N,)
            pl.BlockSpec(memory_space=pltpu.SMEM),                   # w_ir  (N,)
            pl.BlockSpec(memory_space=pltpu.SMEM),                   # conv weights (2,2)
            pl.BlockSpec((1, C, tile_hw), lambda n, t: (n, 0, t)),   # x_rgb
            pl.BlockSpec((1, C, tile_hw), lambda n, t: (n, 0, t)),   # x_ir
        ],
        out_specs=[
            pl.BlockSpec((1, C, tile_hw), lambda n, t: (n, 0, t)),
            pl.BlockSpec((1, C, tile_hw), lambda n, t: (n, 0, t)),
        ],
    )

    out_r, out_i = pl.pallas_call(
        functools.partial(_spatial_agg_kernel, inv_bn=inv_bn, inv_2c=inv_2c),
        out_shape=(jax.ShapeDtypeStruct((N, C, hw_pad), dtype),
                   jax.ShapeDtypeStruct((N, C, hw_pad), dtype)),
        grid_spec=grid_spec,
        compiler_params=pltpu.CompilerParams(
            dimension_semantics=("parallel", "parallel"),
            vmem_limit_bytes=_VMEM_LIMIT_BYTES),
    )(wr, wi, cw, xr, xi)

    if hw_pad != HW:
        out_r = out_r[:, :, :HW]
        out_i = out_i[:, :, :HW]
    return out_r.reshape(N, C, H, W), out_i.reshape(N, C, H, W)


def _reference(x_rgb, x_ir, w_rgb, w_ir, conv_w, eps=_BN_EPS):
    """Pure-JAX reference mirroring the PyTorch forward (eval-mode BN)."""
    inv_bn = 1.0 / math.sqrt(1.0 + eps)
    x_cat = jnp.concatenate([x_rgb, x_ir], axis=1)
    attn_in = jnp.concatenate([x_cat.mean(axis=1, keepdims=True),
                               x_cat.max(axis=1, keepdims=True)], axis=1)

    def gate(row):
        s = (conv_w[row, 0] * attn_in[:, 0:1] +
             conv_w[row, 1] * attn_in[:, 1:2]) * inv_bn
        s = s * jax.nn.sigmoid(s)
        return jax.nn.sigmoid(s)

    w_rs, w_ts = gate(0), gate(1)
    x_rgb_sa = w_rs * x_rgb + x_rgb
    x_ir_sa = w_ts * x_ir + x_ir
    out_rgb = (w_rgb.reshape(-1, 1, 1, 1) * x_rgb_sa) * inv_bn
    out_ir = (w_ir.reshape(-1, 1, 1, 1) * x_ir_sa) * inv_bn
    return out_rgb, out_ir


if __name__ == "__main__":
    key = jax.random.PRNGKey(0)
    k1, k2, k3, k4, k5, k6 = jax.random.split(key, 6)

    N, C, H, W = 2, 4, 16, 16
    x_rgb = jax.random.normal(k1, (N, C, H, W), jnp.float32)
    x_ir = jax.random.normal(k2, (N, C, H, W), jnp.float32)
    # illumination gate weights (one scalar per sample, broadcast over C,H,W)
    w_rgb = jax.random.uniform(k3, (N, 1, 1, 1), jnp.float32)
    w_ir = jax.random.uniform(k4, (N, 1, 1, 1), jnp.float32)

    # Deterministic Xavier-uniform init for the two 1x1 convs (shape (1,2,1,1)):
    # fan_in = 2, fan_out = 1 -> bound = sqrt(6 / 3) = sqrt(2).
    bound = float(np.sqrt(6.0 / (2.0 + 1.0)))
    conv_rgb_w = jax.random.uniform(k5, (2,), jnp.float32, -bound, bound)
    conv_ir_w = jax.random.uniform(k6, (2,), jnp.float32, -bound, bound)
    conv_w = jnp.stack([conv_rgb_w, conv_ir_w], axis=0)   # (2, 2)

    out_rgb, out_ir = spatial_aggregation(x_rgb, x_ir, w_rgb, w_ir, conv_w)
    jax.block_until_ready((out_rgb, out_ir))

    ref_rgb, ref_ir = _reference(x_rgb, x_ir, w_rgb, w_ir, conv_w)
    np.testing.assert_allclose(np.asarray(out_rgb), np.asarray(ref_rgb),
                               rtol=1e-5, atol=1e-5)
    np.testing.assert_allclose(np.asarray(out_ir), np.asarray(ref_ir),
                               rtol=1e-5, atol=1e-5)

    print("KERNEL_OK")
</pallas_src>

<mosaic_0001>
module attributes {stable_mosaic.version = 11 : i64} {
  func.func @_spatial_agg_kernel(%arg0: i32, %arg1: i32, %arg2: memref<2xf32, #tpu.memory_space<smem>>, %arg3: memref<2xf32, #tpu.memory_space<smem>>, %arg4: memref<2x2xf32, #tpu.memory_space<smem>>, %arg5: memref<1x4x256xf32, #tpu.memory_space<vmem>>, %arg6: memref<1x4x256xf32, #tpu.memory_space<vmem>>, %arg7: memref<1x4x256xf32, #tpu.memory_space<vmem>>, %arg8: memref<1x4x256xf32, #tpu.memory_space<vmem>>) attributes {dimension_semantics = [#tpu.dimension_semantics<parallel>, #tpu.dimension_semantics<parallel>], iteration_bounds = array<i64: 2, 1>, scalar_prefetch = 0 : i64, scratch_operands = 0 : i64, tpu.core_type = #tpu.core_type<tc>, window_params = [{transform_indices = @transform_0, window_bounds = array<i64: 2>}, {transform_indices = @transform_1, window_bounds = array<i64: 2>}, {transform_indices = @transform_2, window_bounds = array<i64: 2, 2>}, {transform_indices = @transform_3, window_bounds = array<i64: 1, 4, 256>}, {transform_indices = @transform_4, window_bounds = array<i64: 1, 4, 256>}, {transform_indices = @transform_5, window_bounds = array<i64: 1, 4, 256>}, {transform_indices = @transform_6, window_bounds = array<i64: 1, 4, 256>}]} {
    %c0 = arith.constant 0 : index
    %c0_0 = arith.constant 0 : index
    %c0_1 = arith.constant 0 : index
    %0 = vector.load %arg5[%c0, %c0_0, %c0_1] : memref<1x4x256xf32, #tpu.memory_space<vmem>>, vector<1x4x256xf32>
    %1 = vector.shape_cast %0 : vector<1x4x256xf32> to vector<4x256xf32>
    %c0_2 = arith.constant 0 : index
    %c0_3 = arith.constant 0 : index
    %c0_4 = arith.constant 0 : index
    %2 = vector.load %arg6[%c0_2, %c0_3, %c0_4] : memref<1x4x256xf32, #tpu.memory_space<vmem>>, vector<1x4x256xf32>
    %3 = vector.shape_cast %2 : vector<1x4x256xf32> to vector<4x256xf32>
    %cst = arith.constant dense<0.000000e+00> : vector<256xf32>
    %4 = vector.multi_reduction <add>, %1, %cst [0] : vector<4x256xf32> to vector<256xf32>
    %5 = vector.shape_cast %4 : vector<256xf32> to vector<1x256xf32>
    %cst_5 = arith.constant dense<0.000000e+00> : vector<256xf32>
    %6 = vector.multi_reduction <add>, %3, %cst_5 [0] : vector<4x256xf32> to vector<256xf32>
    %7 = vector.shape_cast %6 : vector<256xf32> to vector<1x256xf32>
    %8 = arith.addf %5, %7 : vector<1x256xf32>
    %cst_6 = arith.constant 1.250000e-01 : f32
    %9 = vector.broadcast %cst_6 : f32 to vector<1x256xf32>
    %10 = arith.mulf %8, %9 : vector<1x256xf32>
    %cst_7 = arith.constant dense<0xFF800000> : vector<256xf32>
    %11 = vector.multi_reduction <maximumf>, %1, %cst_7 [0] : vector<4x256xf32> to vector<256xf32>
    %12 = vector.shape_cast %11 : vector<256xf32> to vector<1x256xf32>
    %cst_8 = arith.constant dense<0xFF800000> : vector<256xf32>
    %13 = vector.multi_reduction <maximumf>, %3, %cst_8 [0] : vector<4x256xf32> to vector<256xf32>
    %14 = vector.shape_cast %13 : vector<256xf32> to vector<1x256xf32>
    %15 = arith.maximumf %12, %14 : vector<1x256xf32>
    %c0_9 = arith.constant 0 : index
    %c0_10 = arith.constant 0 : index
    %16 = memref.load %arg4[%c0_9, %c0_10] : memref<2x2xf32, #tpu.memory_space<smem>>
    %c0_11 = arith.constant 0 : index
    %c1 = arith.constant 1 : index
    %17 = memref.load %arg4[%c0_11, %c1] : memref<2x2xf32, #tpu.memory_space<smem>>
    %18 = vector.broadcast %16 : f32 to vector<1x256xf32>
    %19 = arith.mulf %18, %10 : vector<1x256xf32>
    %20 = vector.broadcast %17 : f32 to vector<1x256xf32>
    %21 = arith.mulf %20, %15 : vector<1x256xf32>
    %22 = arith.addf %19, %21 : vector<1x256xf32>
    %cst_12 = arith.constant 0.999994993 : f32
    %23 = vector.broadcast %cst_12 : f32 to vector<1x256xf32>
    %24 = arith.mulf %22, %23 : vector<1x256xf32>
    %25 = arith.negf %24 : vector<1x256xf32>
    %26 = math.exp %25 : vector<1x256xf32>
    %cst_13 = arith.constant 1.000000e+00 : f32
    %27 = vector.broadcast %cst_13 : f32 to vector<1x256xf32>
    %28 = arith.addf %27, %26 : vector<1x256xf32>
    %29 = arith.divf %27, %28 : vector<1x256xf32>
    %30 = arith.mulf %24, %29 : vector<1x256xf32>
    %31 = arith.negf %30 : vector<1x256xf32>
    %32 = math.exp %31 : vector<1x256xf32>
    %cst_14 = arith.constant 1.000000e+00 : f32
    %33 = vector.broadcast %cst_14 : f32 to vector<1x256xf32>
    %34 = arith.addf %33, %32 : vector<1x256xf32>
    %35 = arith.divf %33, %34 : vector<1x256xf32>
    %c1_15 = arith.constant 1 : index
    %c0_16 = arith.constant 0 : index
    %36 = memref.load %arg4[%c1_15, %c0_16] : memref<2x2xf32, #tpu.memory_space<smem>>
    %c1_17 = arith.constant 1 : index
    %c1_18 = arith.constant 1 : index
    %37 = memref.load %arg4[%c1_17, %c1_18] : memref<2x2xf32, #tpu.memory_space<smem>>
    %38 = vector.broadcast %36 : f32 to vector<1x256xf32>
    %39 = arith.mulf %38, %10 : vector<1x256xf32>
    %40 = vector.broadcast %37 : f32 to vector<1x256xf32>
    %41 = arith.mulf %40, %15 : vector<1x256xf32>
    %42 = arith.addf %39, %41 : vector<1x256xf32>
    %cst_19 = arith.constant 0.999994993 : f32
    %43 = vector.broadcast %cst_19 : f32 to vector<1x256xf32>
    %44 = arith.mulf %42, %43 : vector<1x256xf32>
    %45 = arith.negf %44 : vector<1x256xf32>
    %46 = math.exp %45 : vector<1x256xf32>
    %cst_20 = arith.constant 1.000000e+00 : f32
    %47 = vector.broadcast %cst_20 : f32 to vector<1x256xf32>
    %48 = arith.addf %47, %46 : vector<1x256xf32>
    %49 = arith.divf %47, %48 : vector<1x256xf32>
    %50 = arith.mulf %44, %49 : vector<1x256xf32>
    %51 = arith.negf %50 : vector<1x256xf32>
    %52 = math.exp %51 : vector<1x256xf32>
    %cst_21 = arith.constant 1.000000e+00 : f32
    %53 = vector.broadcast %cst_21 : f32 to vector<1x256xf32>
    %54 = arith.addf %53, %52 : vector<1x256xf32>
    %55 = arith.divf %53, %54 : vector<1x256xf32>
    %56 = arith.index_cast %arg0 : i32 to index
    %57 = memref.load %arg2[%56] : memref<2xf32, #tpu.memory_space<smem>>
    %cst_22 = arith.constant 0.999994993 : f32
    %58 = arith.mulf %57, %cst_22 : f32
    %cst_23 = arith.constant 1.000000e+00 : f32
    %59 = vector.broadcast %cst_23 : f32 to vector<1x256xf32>
    %60 = arith.addf %35, %59 : vector<1x256xf32>
    %61 = vector.broadcast %58 : f32 to vector<1x256xf32>
    %62 = arith.mulf %61, %60 : vector<1x256xf32>
    %63 = arith.index_cast %arg0 : i32 to index
    %64 = memref.load %arg3[%63] : memref<2xf32, #tpu.memory_space<smem>>
    %cst_24 = arith.constant 0.999994993 : f32
    %65 = arith.mulf %64, %cst_24 : f32
    %cst_25 = arith.constant 1.000000e+00 : f32
    %66 = vector.broadcast %cst_25 : f32 to vector<1x256xf32>
    %67 = arith.addf %55, %66 : vector<1x256xf32>
    %68 = vector.broadcast %65 : f32 to vector<1x256xf32>
    %69 = arith.mulf %68, %67 : vector<1x256xf32>
    %70 = vector.broadcast %62 : vector<1x256xf32> to vector<4x256xf32>
    %71 = arith.mulf %70, %1 : vector<4x256xf32>
    %c0_26 = arith.constant 0 : index
    %c0_27 = arith.constant 0 : index
    %c0_28 = arith.constant 0 : index
    %72 = vector.load %arg7[%c0_26, %c0_27, %c0_28] : memref<1x4x256xf32, #tpu.memory_space<vmem>>, vector<1x4x256xf32>
    %73 = vector.shape_cast %72 : vector<1x4x256xf32> to vector<4x256xf32>
    %74 = vector.shape_cast %71 : vector<4x256xf32> to vector<1x4x256xf32>
    tpu.vector_store %arg7[%c0_26, %c0_27, %c0_28], %74 {strides = array<i32>} : memref<1x4x256xf32, #tpu.memory_space<vmem>>, vector<1x4x256xf32>,
    %75 = vector.broadcast %69 : vector<1x256xf32> to vector<4x256xf32>
    %76 = arith.mulf %75, %3 : vector<4x256xf32>
    %c0_29 = arith.constant 0 : index
    %c0_30 = arith.constant 0 : index
    %c0_31 = arith.constant 0 : index
    %77 = vector.load %arg8[%c0_29, %c0_30, %c0_31] : memref<1x4x256xf32, #tpu.memory_space<vmem>>, vector<1x4x256xf32>
    %78 = vector.shape_cast %77 : vector<1x4x256xf32> to vector<4x256xf32>
    %79 = vector.shape_cast %76 : vector<4x256xf32> to vector<1x4x256xf32>
    tpu.vector_store %arg8[%c0_29, %c0_30, %c0_31], %79 {strides = array<i32>} : memref<1x4x256xf32, #tpu.memory_space<vmem>>, vector<1x4x256xf32>,
    return
  }
  func.func @transform_0(%arg0: i32, %arg1: i32) -> i32 {
    %c0_i32 = arith.constant 0 : i32
    %c0_i32_0 = arith.constant 0 : i32
    return %c0_i32 : i32
  }
  func.func @transform_1(%arg0: i32, %arg1: i32) -> i32 {
    %c0_i32 = arith.constant 0 : i32
    %c0_i32_0 = arith.constant 0 : i32
    return %c0_i32 : i32
  }
  func.func @transform_2(%arg0: i32, %arg1: i32) -> (i32, i32) {
    %c0_i32 = arith.constant 0 : i32
    %c0_i32_0 = arith.constant 0 : i32
    %c0_i32_1 = arith.constant 0 : i32
    return %c0_i32, %c0_i32_0 : i32, i32
  }
  func.func @transform_3(%arg0: i32, %arg1: i32) -> (i32, i32, i32) {
    %c0_i32 = arith.constant 0 : i32
    %c0_i32_0 = arith.constant 0 : i32
    return %arg0, %c0_i32, %arg1 : i32, i32, i32
  }
  func.func @transform_4(%arg0: i32, %arg1: i32) -> (i32, i32, i32) {
    %c0_i32 = arith.constant 0 : i32
    %c0_i32_0 = arith.constant 0 : i32
    return %arg0, %c0_i32, %arg1 : i32, i32, i32
  }
  func.func @transform_5(%arg0: i32, %arg1: i32) -> (i32, i32, i32) {
    %c0_i32 = arith.constant 0 : i32
    %c0_i32_0 = arith.constant 0 : i32
    return %arg0, %c0_i32, %arg1 : i32, i32, i32
  }
  func.func @transform_6(%arg0: i32, %arg1: i32) -> (i32, i32, i32) {
    %c0_i32 = arith.constant 0 : i32
    %c0_i32_0 = arith.constant 0 : i32
    return %arg0, %c0_i32, %arg1 : i32, i32, i32
  }
}

</mosaic_0001>

<llo_original>
// kernel: tpu_custom_call.1
$region0: #{tpu_custom_call.1}
  #allocation0 [shape = 'u32[]', space=smem, size = 0x4, offset = 0x4, fixed_abs, tag = 'smem constant byte address 0x4 - core index']
  #allocation1 [shape = 'u32[72,128]{1,0:T(1,128)}', space=vmem, size = 0x9000, scoped, tag = 'internal scratch']
  %s0 = inlined_call_operand.hbm [shape: f32[2], index: 0, kind: input, shape index: {}]
  %s1 = inlined_call_operand.hbm [shape: f32[2], index: 1, kind: input, shape index: {}]
  %s2 = inlined_call_operand.hbm [shape: f32[2,2], index: 2, kind: input, shape index: {}]
  %s3 = inlined_call_operand.hbm [shape: f32[2,4,256], index: 3, kind: input, shape index: {}]
  %s4 = inlined_call_operand.hbm [shape: f32[2,4,256], index: 4, kind: input, shape index: {}]
  %s5 = inlined_call_operand.hbm [shape: f32[2,4,256], index: 5, kind: output, shape index: {0}]
  %s6 = inlined_call_operand.hbm [shape: f32[2,4,256], index: 6, kind: output, shape index: {1}]
  %7 = xla_tuple %s5, %s6
  %s8 = sld [smem:[#allocation0]]
  $region81: #{tpu_custom_call.1} parent=0
    _
  %s10 = ssub.s32 1, %s8
  %s11 = scalar_select 0, %s10, %s8
  $region1: #{tpu_custom_call.1} parent=0
    #allocation2 [shape = 'u8[512]{0}', space=smem, size = 0x200, scoped, tag = 'input window, operand 0, single buffered']
    #allocation3 [shape = 's32[2]{0}', space=sflag, size = 0x8, scoped, tag = 'scoped memory for tpu_custom_call.1']
    #allocation4 [shape = 's32[2]{0}', space=sflag, size = 0x8, scoped, tag = 'scoped memory for tpu_custom_call.1']
    #allocation5 [shape = 's32[2]{0}', space=sflag, size = 0x8, scoped, tag = 'scoped memory for tpu_custom_call.1']
    #allocation6 [shape = 'u8[512]{0}', space=smem, size = 0x200, scoped, tag = 'input window, operand 1, single buffered']
    #allocation7 [shape = 's32[1]{0}', space=sflag, size = 0x4, scoped, tag = 'scoped memory for tpu_custom_call.1']
    #allocation8 [shape = 'u8[1024]{0}', space=smem, size = 0x400, scoped, tag = 'input window, operand 2, single buffered']
    #allocation9 [shape = 'u8[8192]{0}', space=vmem, size = 0x2000, scoped, tag = 'input window, operand 3']
    #allocation10 [shape = 'u8[8192]{0}', space=vmem, size = 0x2000, scoped, tag = 'input window, operand 4']
    #allocation11 [shape = 's32[2]{0}', space=sflag, size = 0x8, scoped, tag = 'scoped memory for tpu_custom_call.1']
    #allocation12 [shape = 'u8[8192]{0}', space=vmem, size = 0x2000, scoped, tag = 'output window, operand 0']
    #allocation13 [shape = 'u8[8192]{0}', space=vmem, size = 0x2000, scoped, tag = 'output window, operand 1']
    #allocation14 [shape = 's32[2]{0}', space=sflag, size = 0x8, scoped, tag = 'scoped memory for tpu_custom_call.1']
    %12 = vsyncpa [#allocation5], 0
    %13 = vsyncpa [#allocation7], 0
    %14 = vsyncpa [#allocation3], 0
    %s15 = scalar_lea.sflag [#allocation3], 1
    %16 = vsyncpa %s15, 0
    %17 = vsyncpa [#allocation11], 0
    %s18 = scalar_lea.sflag [#allocation11], 1
    %19 = vsyncpa %s18, 0
    %20 = vsyncpa [#allocation4], 0
    %s21 = scalar_lea.sflag [#allocation4], 1
    %22 = vsyncpa %s21, 0
    %23 = vsyncpa [#allocation14], 0
    %s24 = scalar_lea.sflag [#allocation14], 1
    %25 = vsyncpa %s24, 0
    loop: start=0, step=1, limit=4
    $region2: #{tpu_custom_call.1} parent=1 // loop_pre_header
      _
    $region3: #{tpu_custom_call.1} parent=1 // loop_header
      %s27 = sphi 0, %s31
      %p28 = scmp.ge.s32.totalorder %s27, 4
      %s34 = sphi 0, %s46
      %s35 = sphi 0, %s42
      %s36 = sphi 0, %s34
      %s37 = sphi 0, %s35
      %s38 = sphi 0, %s36
      %s39 = sphi 0, %s37
      %s47 = sphi 0, %s47
      %s49 = sphi 0, %s47
      %s50 = sphi 0, %s49
      %s64 = sphi 0, %s50
      %s68 = sphi 0, %s68
      %s70 = sphi 0, %s68
      %s71 = sphi 0, %s70
      %s85 = sphi 0, %s71
      %s89 = sphi 0, %s89
      %s91 = sphi 0, %s89
      %s92 = sphi 0, %s91
      %s106 = sphi 0, %s92
      %s114 = sphi 0, %s116
      %s117 = sphi 0, %s114
      %s118 = sphi 0, %s117
      %s134 = sphi 0, %s118
      %s142 = sphi 0, %s144
      %s145 = sphi 0, %s142
      %s146 = sphi 0, %s145
      %s162 = sphi 0, %s146
      %s170 = sphi 0, %s172
      %s173 = sphi 0, %s170
      %s174 = sphi 0, %s173
      %s190 = sphi 0, %s174
      %s198 = sphi 0, %s200
      %s201 = sphi 0, %s198
      %s202 = sphi 0, %s201
      %s218 = sphi 0, %s202
    $region4: #{tpu_custom_call.1} parent=1 // loop_header_branch
      %30 = sbr.rel (%p28) target = $region8
    $region5: #{tpu_custom_call.1} parent=1 // loop_body
      %s32 = ssub.s32 %s27, 1
      %s33 = ssub.s32 %s27, 2
      %s40 = sadd.s32 1, %s35
      %p41 = scmp.ge.s32.totalorder %s40, 1
      %s42 = scalar_select %p41, 0, %s40
      %s43 = sadd.s32 1, %s34
      %s44 = scalar_select %p41, %s43, %s34
      %p45 = scmp.ge.s32.totalorder %s44, 2
      %s46 = scalar_select %p45, 0, %s44
      %s48 = sadd.s32 %s47, 1
      %p51 = scmp.eq.s32.totalorder %s27, 1
      %p52 = scmp.ne.s32.totalorder %s47, %s49
      %p53 = scmp.eq.s32.totalorder %s27, 0
      %p54 = por %p52, %p53
      %p55 = scmp.ne.s32.totalorder %s47, %s49
      %p56 = scmp.eq.s32.totalorder %s32, 1
      %p57 = por %p55, %p56
      %p58 = scmp.ne.s32.totalorder %s49, %s50
      %p59 = scmp.eq.s32.totalorder %s32, 0
      %p60 = por %p58, %p59
      %p61 = scmp.ne.s32.totalorder %s49, %s50
      %p62 = scmp.eq.s32.totalorder %s33, 1
      %p63 = por %p61, %p62
      %p65 = scmp.ne.s32.totalorder %s50, %s64
      %p66 = scmp.eq.s32.totalorder %s33, 0
      %p67 = por %p65, %p66
      %s69 = sadd.s32 %s68, 1
      %p72 = scmp.eq.s32.totalorder %s27, 1
      %p73 = scmp.ne.s32.totalorder %s68, %s70
      %p74 = scmp.eq.s32.totalorder %s27, 0
      %p75 = por %p73, %p74
      %p76 = scmp.ne.s32.totalorder %s68, %s70
      %p77 = scmp.eq.s32.totalorder %s32, 1
      %p78 = por %p76, %p77
      %p79 = scmp.ne.s32.totalorder %s70, %s71
      %p80 = scmp.eq.s32.totalorder %s32, 0
      %p81 = por %p79, %p80
      %p82 = scmp.ne.s32.totalorder %s70, %s71
      %p83 = scmp.eq.s32.totalorder %s33, 1
      %p84 = por %p82, %p83
      %p86 = scmp.ne.s32.totalorder %s71, %s85
      %p87 = scmp.eq.s32.totalorder %s33, 0
      %p88 = por %p86, %p87
      %s90 = sadd.s32 %s89, 1
      %p93 = scmp.eq.s32.totalorder %s27, 1
      %p94 = scmp.ne.s32.totalorder %s89, %s91
      %p95 = scmp.eq.s32.totalorder %s27, 0
      %p96 = por %p94, %p95
      %p97 = scmp.ne.s32.totalorder %s89, %s91
      %p98 = scmp.eq.s32.totalorder %s32, 1
      %p99 = por %p97, %p98
      %p100 = scmp.ne.s32.totalorder %s91, %s92
      %p101 = scmp.eq.s32.totalorder %s32, 0
      %p102 = por %p100, %p101
      %p103 = scmp.ne.s32.totalorder %s91, %s92
      %p104 = scmp.eq.s32.totalorder %s33, 1
      %p105 = por %p103, %p104
      %p107 = scmp.ne.s32.totalorder %s92, %s106
      %p108 = scmp.eq.s32.totalorder %s33, 0
      %p109 = por %p107, %p108
      %s110 = ssub.s32 %s34, %s46
      %s111 = ssub.s32 %s35, %s42
      %s112 = sor.u32 %s110, %s111
      %p113 = scmp.eq.s32.totalorder %s112, 0
      %s115 = sadd.s32 %s114, 1
      %s116 = scalar_select %p113, %s114, %s115
      %p119 = pneg %p113
      %p120 = scmp.eq.s32.totalorder %s27, 1
      %p121 = por %p119, %p120
      %p122 = scmp.ne.s32.totalorder %s114, %s117
      %p123 = scmp.eq.s32.totalorder %s27, 0
      %p124 = por %p122, %p123
      %p125 = scmp.ne.s32.totalorder %s114, %s117
      %p126 = scmp.eq.s32.totalorder %s32, 1
      %p127 = por %p125, %p126
      %p128 = scmp.ne.s32.totalorder %s117, %s118
      %p129 = scmp.eq.s32.totalorder %s32, 0
      %p130 = por %p128, %p129
      %p131 = scmp.ne.s32.totalorder %s117, %s118
      %p132 = scmp.eq.s32.totalorder %s33, 1
      %p133 = por %p131, %p132
      %p135 = scmp.ne.s32.totalorder %s118, %s134
      %p136 = scmp.eq.s32.totalorder %s33, 0
      %p137 = por %p135, %p136
      %s138 = ssub.s32 %s34, %s46
      %s139 = ssub.s32 %s35, %s42
      %s140 = sor.u32 %s138, %s139
      %p141 = scmp.eq.s32.totalorder %s140, 0
      %s143 = sadd.s32 %s142, 1
      %s144 = scalar_select %p141, %s142, %s143
      %p147 = pneg %p141
      %p148 = scmp.eq.s32.totalorder %s27, 1
      %p149 = por %p147, %p148
      %p150 = scmp.ne.s32.totalorder %s142, %s145
      %p151 = scmp.eq.s32.totalorder %s27, 0
      %p152 = por %p150, %p151
      %p153 = scmp.ne.s32.totalorder %s142, %s145
      %p154 = scmp.eq.s32.totalorder %s32, 1
      %p155 = por %p153, %p154
      %p156 = scmp.ne.s32.totalorder %s145, %s146
      %p157 = scmp.eq.s32.totalorder %s32, 0
      %p158 = por %p156, %p157
      %p159 = scmp.ne.s32.totalorder %s145, %s146
      %p160 = scmp.eq.s32.totalorder %s33, 1
      %p161 = por %p159, %p160
      %p163 = scmp.ne.s32.totalorder %s146, %s162
      %p164 = scmp.eq.s32.totalorder %s33, 0
      %p165 = por %p163, %p164
      %s166 = ssub.s32 %s34, %s46
      %s167 = ssub.s32 %s35, %s42
      %s168 = sor.u32 %s166, %s167
      %p169 = scmp.eq.s32.totalorder %s168, 0
      %s171 = sadd.s32 %s170, 1
      %s172 = scalar_select %p169, %s170, %s171
      %p175 = pneg %p169
      %p176 = scmp.eq.s32.totalorder %s27, 1
      %p177 = por %p175, %p176
      %p178 = scmp.ne.s32.totalorder %s170, %s173
      %p179 = scmp.eq.s32.totalorder %s27, 0
      %p180 = por %p178, %p179
      %p181 = scmp.ne.s32.totalorder %s170, %s173
      %p182 = scmp.eq.s32.totalorder %s32, 1
      %p183 = por %p181, %p182
      %p184 = scmp.ne.s32.totalorder %s173, %s174
      %p185 = scmp.eq.s32.totalorder %s32, 0
      %p186 = por %p184, %p185
      %p187 = scmp.ne.s32.totalorder %s173, %s174
      %p188 = scmp.eq.s32.totalorder %s33, 1
      %p189 = por %p187, %p188
      %p191 = scmp.ne.s32.totalorder %s174, %s190
      %p192 = scmp.eq.s32.totalorder %s33, 0
      %p193 = por %p191, %p192
      %s194 = ssub.s32 %s34, %s46
      %s195 = ssub.s32 %s35, %s42
      %s196 = sor.u32 %s194, %s195
      %p197 = scmp.eq.s32.totalorder %s196, 0
      %s199 = sadd.s32 %s198, 1
      %s200 = scalar_select %p197, %s198, %s199
      %p203 = pneg %p197
      %p204 = scmp.eq.s32.totalorder %s27, 1
      %p205 = por %p203, %p204
      %p206 = scmp.ne.s32.totalorder %s198, %s201
      %p207 = scmp.eq.s32.totalorder %s27, 0
      %p208 = por %p206, %p207
      %p209 = scmp.ne.s32.totalorder %s198, %s201
      %p210 = scmp.eq.s32.totalorder %s32, 1
      %p211 = por %p209, %p210
      %p212 = scmp.ne.s32.totalorder %s201, %s202
      %p213 = scmp.eq.s32.totalorder %s32, 0
      %p214 = por %p212, %p213
      %p215 = scmp.ne.s32.totalorder %s201, %s202
      %p216 = scmp.eq.s32.totalorder %s33, 1
      %p217 = por %p215, %p216
      %p219 = scmp.ne.s32.totalorder %s202, %s218
      %p220 = scmp.eq.s32.totalorder %s33, 0
      %p221 = por %p219, %p220
      %p222 = scmp.le.s32.totalorder 1, %s27
      %p223 = scmp.lt.s32.totalorder %s27, 3
      %p224 = pnand %p222, %p223
      %p225 = pneg %p224
      // Predicated region
      $region9: #{tpu_custom_call.1} parent=5 // pred_check
        _
      $region10: #{tpu_custom_call.1} parent=5 // pred_check_branch
        %227 = sbr.rel (%p224) target = $region12
      $region11: #{tpu_custom_call.1} parent=5 // pred_region
        %s228 = ssub.s32 %s27, 1
        // Predicated region
        $region13: #{tpu_custom_call.1} parent=11 // pred_check
          %p229 = pneg %p60
        $region14: #{tpu_custom_call.1} parent=11 // pred_check_branch
          %231 = sbr.rel (%p229) target = $region16
        $region15: #{tpu_custom_call.1} parent=11 // pred_region
          %233 = vsyncadd [#allocation5], 0
          %s235 = sshll.u32 %s0, 4
          %s236 = int_to_ptr.hbm [resolvable:$true] %s235
          %238 = dma.hbm_to_smem %s236, 16, [#allocation2], [#allocation5]
        $region16: #{tpu_custom_call.1} parent=11 // pred_fallthru
          _
        // Predicated region
        $region17: #{tpu_custom_call.1} parent=11 // pred_check
          %p239 = pneg %p81
        $region18: #{tpu_custom_call.1} parent=11 // pred_check_branch
          %241 = sbr.rel (%p239) target = $region20
        $region19: #{tpu_custom_call.1} parent=11 // pred_region
          %243 = vsyncadd [#allocation7], 0
          %s245 = sshll.u32 %s1, 4
          %s246 = int_to_ptr.hbm [resolvable:$true] %s245
          %248 = dma.hbm_to_smem %s246, 16, [#allocation6], [#allocation7]
        $region20: #{tpu_custom_call.1} parent=11 // pred_fallthru
          _
        // Predicated region
        $region21: #{tpu_custom_call.1} parent=11 // pred_check
          %p249 = pneg %p102
        $region22: #{tpu_custom_call.1} parent=11 // pred_check_branch
          %251 = sbr.rel (%p249) target = $region24
        $region23: #{tpu_custom_call.1} parent=11 // pred_region
          %253 = vsyncadd [#allocation7], 0
          %s255 = sshll.u32 %s2, 4
          %s256 = int_to_ptr.hbm [resolvable:$true] %s255
          %258 = dma.hbm_to_smem %s256, 32, [#allocation8], [#allocation7]
        $region24: #{tpu_custom_call.1} parent=11 // pred_fallthru
          _
      $region12: #{tpu_custom_call.1} parent=5 // pred_fallthru
        _
      %p259 = scmp.lt.s32.totalorder %s27, 2
      // Predicated region
      $region25: #{tpu_custom_call.1} parent=5 // pred_check
        %p260 = pneg %p259
      $region26: #{tpu_custom_call.1} parent=5 // pred_check_branch
        %262 = sbr.rel (%p260) target = $region28
      $region27: #{tpu_custom_call.1} parent=5 // pred_region
        // Predicated region
        $region29: #{tpu_custom_call.1} parent=27 // pred_check
          %p263 = pneg %p124
        $region30: #{tpu_custom_call.1} parent=27 // pred_check_branch
          %265 = sbr.rel (%p263) target = $region32
        $region31: #{tpu_custom_call.1} parent=27 // pred_region
          %s266 = sand.u32 %s114, 1
          %s267 = scalar_lea.sflag [#allocation3], %s266
          %s268 = sand.u32 %s114, 1
          %s269 = smul.addr %s268, 8
          %s270 = scalar_lea.vmem [#allocation9], %s269
          %s271 = smul.u32 2, %s35
          %273 = vsyncadd %s267, 0
          %s274 = smul.addr %s34, 2
          %s275 = sadd.s32 %s271, %s274
          %s276 = smul.addr %s275, 4
          %s277 = scalar_lea.hbm %s3, %s276
          %s279 = sshll.u32 %s277, 4
          %s280 = int_to_ptr.hbm [resolvable:$true] %s279
          %s281 = sshll.u32 %s270, 4
          %s282 = int_to_ptr.vmem [resolvable:$true] %s281
          %284 = dma.hbm_to_vmem [thread:$0]  %s280, 128, %s282, %s267
        $region32: #{tpu_custom_call.1} parent=27 // pred_fallthru
          _
        // Predicated region
        $region33: #{tpu_custom_call.1} parent=27 // pred_check
          %p285 = pneg %p152
        $region34: #{tpu_custom_call.1} parent=27 // pred_check_branch
          %287 = sbr.rel (%p285) target = $region36
        $region35: #{tpu_custom_call.1} parent=27 // pred_region
          %s288 = sand.u32 %s142, 1
          %s289 = scalar_lea.sflag [#allocation11], %s288
          %s290 = sand.u32 %s142, 1
          %s291 = smul.addr %s290, 8
          %s292 = scalar_lea.vmem [#allocation10], %s291
          %s293 = smul.u32 2, %s35
          %295 = vsyncadd %s289, 0
          %s296 = smul.addr %s34, 2
          %s297 = sadd.s32 %s293, %s296
          %s298 = smul.addr %s297, 4
          %s299 = scalar_lea.hbm %s4, %s298
          %s301 = sshll.u32 %s299, 4
          %s302 = int_to_ptr.hbm [resolvable:$true] %s301
          %s303 = sshll.u32 %s292, 4
          %s304 = int_to_ptr.vmem [resolvable:$true] %s303
          %306 = dma.hbm_to_vmem [thread:$0]  %s302, 128, %s304, %s289
        $region36: #{tpu_custom_call.1} parent=27 // pred_fallthru
          _
      $region28: #{tpu_custom_call.1} parent=5 // pred_fallthru
        _
      %p307 = scmp.le.s32.totalorder 1, %s27
      %p308 = scmp.lt.s32.totalorder %s27, 3
      %p309 = pnand %p307, %p308
      %p310 = pneg %p309
      // Predicated region
      $region37: #{tpu_custom_call.1} parent=5 // pred_check
        _
      $region38: #{tpu_custom_call.1} parent=5 // pred_check_branch
        %312 = sbr.rel (%p309) target = $region40
      $region39: #{tpu_custom_call.1} parent=5 // pred_region
        %s313 = ssub.s32 %s27, 1
        // Predicated region
        $region41: #{tpu_custom_call.1} parent=39 // pred_check
          %p314 = pneg %p60
        $region42: #{tpu_custom_call.1} parent=39 // pred_check_branch
          %316 = sbr.rel (%p314) target = $region44
        $region43: #{tpu_custom_call.1} parent=39 // pred_region
          %318 = dma.done [#allocation5], 16
        $region44: #{tpu_custom_call.1} parent=39 // pred_fallthru
          _
        // Predicated region
        $region45: #{tpu_custom_call.1} parent=39 // pred_check
          %p319 = pneg %p81
        $region46: #{tpu_custom_call.1} parent=39 // pred_check_branch
          %321 = sbr.rel (%p319) target = $region48
        $region47: #{tpu_custom_call.1} parent=39 // pred_region
          %323 = dma.done [#allocation7], 16
        $region48: #{tpu_custom_call.1} parent=39 // pred_fallthru
          _
        // Predicated region
        $region49: #{tpu_custom_call.1} parent=39 // pred_check
          %p324 = pneg %p102
        $region50: #{tpu_custom_call.1} parent=39 // pred_check_branch
          %326 = sbr.rel (%p324) target = $region52
        $region51: #{tpu_custom_call.1} parent=39 // pred_region
          %328 = dma.done [#allocation7], 32
        $region52: #{tpu_custom_call.1} parent=39 // pred_fallthru
          _
        %s329 = sand.u32 %s117, 1
        %s330 = scalar_lea.sflag [#allocation3], %s329
        %s331 = sand.u32 %s117, 1
        %s332 = smul.addr %s331, 8
        %s333 = scalar_lea.vmem [#allocation9], %s332
        // Predicated region
        $region53: #{tpu_custom_call.1} parent=39 // pred_check
          %p334 = pneg %p130
        $region54: #{tpu_custom_call.1} parent=39 // pred_check_branch
          %336 = sbr.rel (%p334) target = $region56
        $region55: #{tpu_custom_call.1} parent=39 // pred_region
          %338 = dma.done %s330, 128
        $region56: #{tpu_custom_call.1} parent=39 // pred_fallthru
          _
        %s339 = sand.u32 %s145, 1
        %s340 = scalar_lea.sflag [#allocation11], %s339
        %s341 = sand.u32 %s145, 1
        %s342 = smul.addr %s341, 8
        %s343 = scalar_lea.vmem [#allocation10], %s342
        // Predicated region
        $region57: #{tpu_custom_call.1} parent=39 // pred_check
          %p344 = pneg %p158
        $region58: #{tpu_custom_call.1} parent=39 // pred_check_branch
          %346 = sbr.rel (%p344) target = $region60
        $region59: #{tpu_custom_call.1} parent=39 // pred_region
          %348 = dma.done %s340, 128
        $region60: #{tpu_custom_call.1} parent=39 // pred_fallthru
          _
        %349 = sfence
        %p350 = pneg %p60
        %p351 = pneg %p57
        %p352 = pneg %p81
        %p353 = pneg %p78
        %p354 = pneg %p102
        %p355 = pneg %p99
        %s356 = sand.u32 %s117, 1
        %s357 = scalar_lea.sflag [#allocation3], %s356
        %s358 = sand.u32 %s117, 1
        %s359 = smul.addr %s358, 8
        %s360 = scalar_lea.vmem [#allocation9], %s359
        %p361 = pneg %p130
        %p362 = pneg %p127
        %s363 = sand.u32 %s145, 1
        %s364 = scalar_lea.sflag [#allocation11], %s363
        %s365 = sand.u32 %s145, 1
        %s366 = smul.addr %s365, 8
        %s367 = scalar_lea.vmem [#allocation10], %s366
        %p368 = pneg %p158
        %p369 = pneg %p155
        %p370 = pneg %p186
        %p371 = pneg %p183
        %s372 = sand.u32 %s173, 1
        %s373 = scalar_lea.sflag [#allocation4], %s372
        %s374 = sand.u32 %s173, 1
        %s375 = smul.addr %s374, 8
        %s376 = scalar_lea.vmem [#allocation12], %s375
        %p377 = pneg %p214
        %p378 = pneg %p211
        %s379 = sand.u32 %s201, 1
        %s380 = scalar_lea.sflag [#allocation14], %s379
        %s381 = sand.u32 %s201, 1
        %s382 = smul.addr %s381, 8
        %s383 = scalar_lea.vmem [#allocation13], %s382
        %s384 = smul.u32 2, %s37
        %s385 = smul.u32 2, %s37
        %s386 = smul.u32 2, %s37
        %s387 = smul.u32 2, %s37
        %v388 = vld [vmem:[%s333] sm:$0xff]
        %v389 = vld [vmem:[%s343] sm:$0xff]
        %391 = vst [vmem:[#allocation1] ss:$2 sm:$0xff] %v388
        %v392 = vld.sshfl [vmem:[#allocation1] sm:$0xff pattern:$0x75316420]
        %v393 = vld.sshfl [vmem:[#allocation1 + $0x8] sm:$0xff pattern:$0x75316420]
        %vm396 = vcmask 1043456
        %v397 = vsel %vm396, %v392, 0.0
        %v398 = vrot.slane %v397, 4
        %v399 = vadd.f32 %v397, %v398
        %v400 = vrot.slane %v399, 2
        %v401 = vadd.f32 %v399, %v400
        %v402 = vrot.slane %v401, 1
        %v403 = vadd.f32 %v401, %v402
        %v404 = vsel %vm396, %v393, 0.0
        %v405 = vrot.slane %v404, 4
        %v406 = vadd.f32 %v404, %v405
        %v407 = vrot.slane %v406, 2
        %v408 = vadd.f32 %v406, %v407
        %v409 = vrot.slane %v408, 1
        %v410 = vadd.f32 %v408, %v409
        %412 = vst [vmem:[#allocation1] ss:$2 sm:$0xff] %v389
        %v413 = vld.sshfl [vmem:[#allocation1] sm:$0xff pattern:$0x75316420]
        %v414 = vld.sshfl [vmem:[#allocation1 + $0x8] sm:$0xff pattern:$0x75316420]
        %v417 = vsel %vm396, %v413, 0.0
        %v418 = vrot.slane %v417, 4
        %v419 = vadd.f32 %v417, %v418
        %v420 = vrot.slane %v419, 2
        %v421 = vadd.f32 %v419, %v420
        %v422 = vrot.slane %v421, 1
        %v423 = vadd.f32 %v421, %v422
        %v424 = vsel %vm396, %v414, 0.0
        %v425 = vrot.slane %v424, 4
        %v426 = vadd.f32 %v424, %v425
        %v427 = vrot.slane %v426, 2
        %v428 = vadd.f32 %v426, %v427
        %v429 = vrot.slane %v428, 1
        %v430 = vadd.f32 %v428, %v429
        %v431 = vadd.f32 %v403, %v423
        %v432 = vadd.f32 %v410, %v430
        %v433 = vmul.f32 %v431, 0.125
        %v434 = vmul.f32 %v432, 0.125
        %435 = vst [vmem:[#allocation1] ss:$2 sm:$0xff] %v388
        %v436 = vld.sshfl [vmem:[#allocation1] sm:$0xff pattern:$0x75316420]
        %v437 = vld.sshfl [vmem:[#allocation1 + $0x8] sm:$0xff pattern:$0x75316420]
        %v440 = vsel %vm396, %v436, -inf
        %v441 = vrot.slane %v440, 4
        %v442 = vmax.f32 %v440, %v441
        %v443 = vrot.slane %v442, 2
        %v444 = vmax.f32 %v442, %v443
        %v445 = vrot.slane %v444, 1
        %v446 = vmax.f32 %v444, %v445
        %v447 = vsel %vm396, %v437, -inf
        %v448 = vrot.slane %v447, 4
        %v449 = vmax.f32 %v447, %v448
        %v450 = vrot.slane %v449, 2
        %v451 = vmax.f32 %v449, %v450
        %v452 = vrot.slane %v451, 1
        %v453 = vmax.f32 %v451, %v452
        %454 = vst [vmem:[#allocation1] ss:$2 sm:$0xff] %v389
        %v455 = vld.sshfl [vmem:[#allocation1] sm:$0xff pattern:$0x75316420]
        %v456 = vld.sshfl [vmem:[#allocation1 + $0x8] sm:$0xff pattern:$0x75316420]
        %v459 = vsel %vm396, %v455, -inf
        %v460 = vrot.slane %v459, 4
        %v461 = vmax.f32 %v459, %v460
        %v462 = vrot.slane %v461, 2
        %v463 = vmax.f32 %v461, %v462
        %v464 = vrot.slane %v463, 1
        %v465 = vmax.f32 %v463, %v464
        %v466 = vsel %vm396, %v456, -inf
        %v467 = vrot.slane %v466, 4
        %v468 = vmax.f32 %v466, %v467
        %v469 = vrot.slane %v468, 2
        %v470 = vmax.f32 %v468, %v469
        %v471 = vrot.slane %v470, 1
        %v472 = vmax.f32 %v470, %v471
        %v473 = vmax.f32 %v446, %v465
        %v474 = vmax.f32 %v453, %v472
        %s475 = sld [smem:[#allocation8]]
        %s476 = sld [smem:[#allocation8 + $0x1]]
        %v477 = vstv %s475
        %v478 = vmul.f32 %v477, %v433
        %v479 = vmul.f32 %v477, %v434
        %v480 = vstv %s476
        %v481 = vmul.f32 %v480, %v473
        %v482 = vmul.f32 %v480, %v474
        %v483 = vadd.f32 %v478, %v481
        %v484 = vadd.f32 %v479, %v482
        %v485 = vmul.f32 %v483, 0.999995
        %v486 = vmul.f32 %v484, 0.999995
        %v487 = vxor.u32 %v485, 2147483648
        %v488 = vxor.u32 %v486, 2147483648
        %v489 = vmul.f32 %v487, 1.442695
        %v490 = vpow.pop %v489
        %v491 = vmul.f32 %v488, 1.442695
        %v492 = vpow.pop %v491
        %v493 = vadd.f32 %v490, 1.0
        %v494 = vadd.f32 %v492, 1.0
        %v495 = vrcp.pop %v493
        %v496 = vmul.f32 %v493, %v495
        %v497 = vsub.f32 1.0, %v496
        %v498 = vmul.f32 %v495, %v497
        %v499 = vadd.f32 %v495, %v498
        %vm500 = vweird.f32 %v493
        %vm501 = vweird.f32 %v495
        %vm502 = vmor %vm500, %vm501
        %v503 = vsel %vm502, %v495, %v499
        %v504 = vand.u32 2147483647, %v493
        %vm505 = vcmp.eq.f32.partialorder %v504, 8.507059e+37
        %v506 = vand.u32 %v493, 2147483648
        %v507 = vor.u32 1.1754944e-38, %v506
        %v508 = vsel %vm505, %v507, %v503
        %v509 = vmul.f32 1.0, %v508
        %v510 = vrcp.pop %v494
        %v511 = vmul.f32 %v494, %v510
        %v512 = vsub.f32 1.0, %v511
        %v513 = vmul.f32 %v510, %v512
        %v514 = vadd.f32 %v510, %v513
        %vm515 = vweird.f32 %v494
        %vm516 = vweird.f32 %v510
        %vm517 = vmor %vm515, %vm516
        %v518 = vsel %vm517, %v510, %v514
        %v519 = vand.u32 2147483647, %v494
        %vm520 = vcmp.eq.f32.partialorder %v519, 8.507059e+37
        %v521 = vand.u32 %v494, 2147483648
        %v522 = vor.u32 1.1754944e-38, %v521
        %v523 = vsel %vm520, %v522, %v518
        %v524 = vmul.f32 1.0, %v523
        %v525 = vmul.f32 %v485, %v509
        %v526 = vmul.f32 %v486, %v524
        %v527 = vxor.u32 %v525, 2147483648
        %v528 = vxor.u32 %v526, 2147483648
        %v529 = vmul.f32 %v527, 1.442695
        %v530 = vpow.pop %v529
        %v531 = vmul.f32 %v528, 1.442695
        %v532 = vpow.pop %v531
        %v533 = vadd.f32 %v530, 1.0
        %v534 = vadd.f32 %v532, 1.0
        %v535 = vrcp.pop %v533
        %v536 = vmul.f32 %v533, %v535
        %v537 = vsub.f32 1.0, %v536
        %v538 = vmul.f32 %v535, %v537
        %v539 = vadd.f32 %v535, %v538
        %vm540 = vweird.f32 %v533
        %vm541 = vweird.f32 %v535
        %vm542 = vmor %vm540, %vm541
        %v543 = vsel %vm542, %v535, %v539
        %v544 = vand.u32 2147483647, %v533
        %vm545 = vcmp.eq.f32.partialorder %v544, 8.507059e+37
        %v546 = vand.u32 %v533, 2147483648
        %v547 = vor.u32 1.1754944e-38, %v546
        %v548 = vsel %vm545, %v547, %v543
        %v549 = vmul.f32 1.0, %v548
        %v550 = vrcp.pop %v534
        %v551 = vmul.f32 %v534, %v550
        %v552 = vsub.f32 1.0, %v551
        %v553 = vmul.f32 %v550, %v552
        %v554 = vadd.f32 %v550, %v553
        %vm555 = vweird.f32 %v534
        %vm556 = vweird.f32 %v550
        %vm557 = vmor %vm555, %vm556
        %v558 = vsel %vm557, %v550, %v554
        %v559 = vand.u32 2147483647, %v534
        %vm560 = vcmp.eq.f32.partialorder %v559, 8.507059e+37
        %v561 = vand.u32 %v534, 2147483648
        %v562 = vor.u32 1.1754944e-38, %v561
        %v563 = vsel %vm560, %v562, %v558
        %v564 = vmul.f32 1.0, %v563
        %s565 = sld [smem:[#allocation8 + $0x80]]
        %s566 = sld [smem:[#allocation8 + $0x81]]
        %v567 = vstv %s565
        %v568 = vmul.f32 %v567, %v433
        %v569 = vmul.f32 %v567, %v434
        %v570 = vstv %s566
        %v571 = vmul.f32 %v570, %v473
        %v572 = vmul.f32 %v570, %v474
        %v573 = vadd.f32 %v568, %v571
        %v574 = vadd.f32 %v569, %v572
        %v575 = vmul.f32 %v573, 0.999995
        %v576 = vmul.f32 %v574, 0.999995
        %v577 = vxor.u32 %v575, 2147483648
        %v578 = vxor.u32 %v576, 2147483648
        %v579 = vmul.f32 %v577, 1.442695
        %v580 = vpow.pop %v579
        %v581 = vmul.f32 %v578, 1.442695
        %v582 = vpow.pop %v581
        %v583 = vadd.f32 %v580, 1.0
        %v584 = vadd.f32 %v582, 1.0
        %v585 = vrcp.pop %v583
        %v586 = vmul.f32 %v583, %v585
        %v587 = vsub.f32 1.0, %v586
        %v588 = vmul.f32 %v585, %v587
        %v589 = vadd.f32 %v585, %v588
        %vm590 = vweird.f32 %v583
        %vm591 = vweird.f32 %v585
        %vm592 = vmor %vm590, %vm591
        %v593 = vsel %vm592, %v585, %v589
        %v594 = vand.u32 2147483647, %v583
        %vm595 = vcmp.eq.f32.partialorder %v594, 8.507059e+37
        %v596 = vand.u32 %v583, 2147483648
        %v597 = vor.u32 1.1754944e-38, %v596
        %v598 = vsel %vm595, %v597, %v593
        %v599 = vmul.f32 1.0, %v598
        %v600 = vrcp.pop %v584
        %v601 = vmul.f32 %v584, %v600
        %v602 = vsub.f32 1.0, %v601
        %v603 = vmul.f32 %v600, %v602
        %v604 = vadd.f32 %v600, %v603
        %vm605 = vweird.f32 %v584
        %vm606 = vweird.f32 %v600
        %vm607 = vmor %vm605, %vm606
        %v608 = vsel %vm607, %v600, %v604
        %v609 = vand.u32 2147483647, %v584
        %vm610 = vcmp.eq.f32.partialorder %v609, 8.507059e+37
        %v611 = vand.u32 %v584, 2147483648
        %v612 = vor.u32 1.1754944e-38, %v611
        %v613 = vsel %vm610, %v612, %v608
        %v614 = vmul.f32 1.0, %v613
        %v615 = vmul.f32 %v575, %v599
        %v616 = vmul.f32 %v576, %v614
        %v617 = vxor.u32 %v615, 2147483648
        %v618 = vxor.u32 %v616, 2147483648
        %v619 = vmul.f32 %v617, 1.442695
        %v620 = vpow.pop %v619
        %v621 = vmul.f32 %v618, 1.442695
        %v622 = vpow.pop %v621
        %v623 = vadd.f32 %v620, 1.0
        %v624 = vadd.f32 %v622, 1.0
        %v625 = vrcp.pop %v623
        %v626 = vmul.f32 %v623, %v625
        %v627 = vsub.f32 1.0, %v626
        %v628 = vmul.f32 %v625, %v627
        %v629 = vadd.f32 %v625, %v628
        %vm630 = vweird.f32 %v623
        %vm631 = vweird.f32 %v625
        %vm632 = vmor %vm630, %vm631
        %v633 = vsel %vm632, %v625, %v629
        %v634 = vand.u32 2147483647, %v623
        %vm635 = vcmp.eq.f32.partialorder %v634, 8.507059e+37
        %v636 = vand.u32 %v623, 2147483648
        %v637 = vor.u32 1.1754944e-38, %v636
        %v638 = vsel %vm635, %v637, %v633
        %v639 = vmul.f32 1.0, %v638
        %v640 = vrcp.pop %v624
        %v641 = vmul.f32 %v624, %v640
        %v642 = vsub.f32 1.0, %v641
        %v643 = vmul.f32 %v640, %v642
        %v644 = vadd.f32 %v640, %v643
        %vm645 = vweird.f32 %v624
        %vm646 = vweird.f32 %v640
        %vm647 = vmor %vm645, %vm646
        %v648 = vsel %vm647, %v640, %v644
        %v649 = vand.u32 2147483647, %v624
        %vm650 = vcmp.eq.f32.partialorder %v649, 8.507059e+37
        %v651 = vand.u32 %v624, 2147483648
        %v652 = vor.u32 1.1754944e-38, %v651
        %v653 = vsel %vm650, %v652, %v648
        %v654 = vmul.f32 1.0, %v653
        %s655 = sld [smem:[#allocation2 + %s36]]
        %s656 = smul.f32 %s655, 0.999995
        %v657 = vadd.f32 %v549, 1.0
        %v658 = vadd.f32 %v564, 1.0
        %v659 = vstv %s656
        %v660 = vmul.f32 %v659, %v657
        %v661 = vmul.f32 %v659, %v658
        %s662 = sld [smem:[#allocation6 + %s36]]
        %s663 = smul.f32 %s662, 0.999995
        %v664 = vadd.f32 %v639, 1.0
        %v665 = vadd.f32 %v654, 1.0
        %v666 = vstv %s663
        %v667 = vmul.f32 %v666, %v664
        %v668 = vmul.f32 %v666, %v665
        %669 = vst [vmem:[#allocation1] ss:$2 sm:$0xff] %v388
        %v670 = vld.sshfl [vmem:[#allocation1] sm:$0xff pattern:$0x75316420]
        %v671 = vld.sshfl [vmem:[#allocation1 + $0x8] sm:$0xff pattern:$0x75316420]
        %v674 = vmul.f32 %v660, %v670
        %v675 = vmul.f32 %v661, %v671
        %v678 = vrot.slane %v675, 4
        %v679 = vsel %vm396, %v674, %v678
        %681 = vst [vmem:[%s376] sm:$0xff] %v679
        %682 = vst [vmem:[#allocation1] ss:$2 sm:$0xff] %v389
        %v683 = vld.sshfl [vmem:[#allocation1] sm:$0xff pattern:$0x75316420]
        %v684 = vld.sshfl [vmem:[#allocation1 + $0x8] sm:$0xff pattern:$0x75316420]
        %v687 = vmul.f32 %v667, %v683
        %v688 = vmul.f32 %v668, %v684
        %v691 = vrot.slane %v688, 4
        %v692 = vsel %vm396, %v687, %v691
        %694 = vst [vmem:[%s383] sm:$0xff] %v692
        %s695 = sand.u32 %s173, 1
        %s696 = scalar_lea.sflag [#allocation4], %s695
        %s697 = sand.u32 %s173, 1
        %s698 = smul.addr %s697, 8
        %s699 = scalar_lea.vmem [#allocation12], %s698
        %s700 = sand.u32 %s201, 1
        %s701 = scalar_lea.sflag [#allocation14], %s700
        %s702 = sand.u32 %s201, 1
        %s703 = smul.addr %s702, 8
        %s704 = scalar_lea.vmem [#allocation13], %s703
        // Predicated region
        $region61: #{tpu_custom_call.1} parent=39 // pred_check
          %p705 = pneg %p183
        $region62: #{tpu_custom_call.1} parent=39 // pred_check_branch
          %707 = sbr.rel (%p705) target = $region64
        $region63: #{tpu_custom_call.1} parent=39 // pred_region
          %s708 = smul.u32 2, %s37
          %710 = vsyncadd %s696, 0
          %s711 = smul.addr %s36, 2
          %s712 = sadd.s32 %s708, %s711
          %s713 = smul.addr %s712, 4
          %s714 = scalar_lea.hbm %s5, %s713
          %s716 = sshll.u32 %s699, 4
          %s717 = int_to_ptr.vmem [resolvable:$true] %s716
          %s718 = sshll.u32 %s714, 4
          %s719 = int_to_ptr.hbm [resolvable:$true] %s718
          %721 = dma.vmem_to_hbm [thread:$0]  %s717, 128, %s719, %s696
        $region64: #{tpu_custom_call.1} parent=39 // pred_fallthru
          _
        // Predicated region
        $region65: #{tpu_custom_call.1} parent=39 // pred_check
          %p722 = pneg %p211
        $region66: #{tpu_custom_call.1} parent=39 // pred_check_branch
          %724 = sbr.rel (%p722) target = $region68
        $region67: #{tpu_custom_call.1} parent=39 // pred_region
          %s725 = smul.u32 2, %s37
          %727 = vsyncadd %s701, 0
          %s728 = smul.addr %s36, 2
          %s729 = sadd.s32 %s725, %s728
          %s730 = smul.addr %s729, 4
          %s731 = scalar_lea.hbm %s6, %s730
          %s733 = sshll.u32 %s704, 4
          %s734 = int_to_ptr.vmem [resolvable:$true] %s733
          %s735 = sshll.u32 %s731, 4
          %s736 = int_to_ptr.hbm [resolvable:$true] %s735
          %738 = dma.vmem_to_hbm [thread:$0]  %s734, 128, %s736, %s701
        $region68: #{tpu_custom_call.1} parent=39 // pred_fallthru
          _
      $region40: #{tpu_custom_call.1} parent=5 // pred_fallthru
        _
      %p739 = scmp.le.s32.totalorder 2, %s27
      // Predicated region
      $region69: #{tpu_custom_call.1} parent=5 // pred_check
        %p740 = pneg %p739
      $region70: #{tpu_custom_call.1} parent=5 // pred_check_branch
        %742 = sbr.rel (%p740) target = $region72
      $region71: #{tpu_custom_call.1} parent=5 // pred_region
        %s743 = ssub.s32 %s27, 2
        // Predicated region
        $region73: #{tpu_custom_call.1} parent=71 // pred_check
          %p744 = pneg %p189
        $region74: #{tpu_custom_call.1} parent=71 // pred_check_branch
          %746 = sbr.rel (%p744) target = $region76
        $region75: #{tpu_custom_call.1} parent=71 // pred_region
          %s747 = sand.u32 %s174, 1
          %s748 = scalar_lea.sflag [#allocation4], %s747
          %s749 = sand.u32 %s174, 1
          %s750 = smul.addr %s749, 8
          %s751 = scalar_lea.vmem [#allocation12], %s750
          %753 = dma.done %s748, 128
        $region76: #{tpu_custom_call.1} parent=71 // pred_fallthru
          _
        // Predicated region
        $region77: #{tpu_custom_call.1} parent=71 // pred_check
          %p754 = pneg %p217
        $region78: #{tpu_custom_call.1} parent=71 // pred_check_branch
          %756 = sbr.rel (%p754) target = $region80
        $region79: #{tpu_custom_call.1} parent=71 // pred_region
          %s757 = sand.u32 %s202, 1
          %s758 = scalar_lea.sflag [#allocation14], %s757
          %s759 = sand.u32 %s202, 1
          %s760 = smul.addr %s759, 8
          %s761 = scalar_lea.vmem [#allocation13], %s760
          %763 = dma.done %s758, 128
        $region80: #{tpu_custom_call.1} parent=71 // pred_fallthru
          _
      $region72: #{tpu_custom_call.1} parent=5 // pred_fallthru
        _
    $region6: #{tpu_custom_call.1} parent=1 // loop_footer
      %s31 = sadd.s32 1, %s27
    $region7: #{tpu_custom_call.1} parent=1 // loop_footer_branch
      %26 = sbr.rel target = $region3
    $region8: #{tpu_custom_call.1} parent=1 // loop_exit
      _
    %764 = vsyncpa [#allocation3], 1
    %s765 = scalar_lea.sflag [#allocation3], 1
    %766 = vsyncpa %s765, 1
    %767 = vsyncpa [#allocation11], 1
    %s768 = scalar_lea.sflag [#allocation11], 1
    %769 = vsyncpa %s768, 1
    %770 = vsyncpa [#allocation4], 1
    %s771 = scalar_lea.sflag [#allocation4], 1
    %772 = vsyncpa %s771, 1
    %773 = vsyncpa [#allocation14], 1
    %s774 = scalar_lea.sflag [#allocation14], 1
    %775 = vsyncpa %s774, 1
    %776 = vsyncpa [#allocation5], 1
    %s777 = scalar_lea.sflag [#allocation5], 1
    %778 = vsyncpa %s777, 1
    %779 = vsyncpa [#allocation7], 1

</llo_original>
